<compile_context>
chip_gen: v7x
topology: tpu7x:2x2x1
jax: 0.10.0
libtpu: 0.0.40
codegen_flags: <defaults>
</compile_context>

<pallas_src>
import functools

import jax
import jax.numpy as jnp
from jax.experimental import pallas as pl
from jax.experimental.pallas import tpu as pltpu

H, W = 11, 10          # defenders, offensive players (Linear(10,10) => W == 10)
N = H * W              # 110 flattened positions (lane axis)


# ----------------------------------------------------------------------------
# Pallas kernel: MatchupAttention for one batch tile of Bt samples.
# ----------------------------------------------------------------------------
def _matchup_kernel(scale_ref, x_ref, mk_ref, bias_ref, out_ref, att_ref):
    f32 = jnp.float32
    x = x_ref[...].astype(f32)                       # (Bt, C, N)

    # Channel pooling: cheap sublane reductions.  1/C is folded into scale[1].
    mx = jnp.max(x, axis=1)                          # (Bt, N)
    sx = jnp.sum(x, axis=1)                          # (Bt, N)

    # 1x1 compress conv collapsed to two scalar FMAs on the VPU.
    comp = scale_ref[0] * mx + scale_ref[1] * sx     # (Bt, N)

    # Linear(10,10) per defender, folded into one (110,110) block-diag matmul.
    focused = (jnp.dot(comp, mk_ref[...], preferred_element_type=f32)
               + bias_ref[...])                      # (Bt, N)
    att = jax.nn.sigmoid(focused)                    # (Bt, N)

    att_ref[...] = att.astype(att_ref.dtype)
    # Gate broadcast over channels; compute in f32, downcast only at the store.
    out_ref[...] = (x * att[:, None, :]).astype(out_ref.dtype)


# ----------------------------------------------------------------------------
# Wrapper: layout glue + pallas_call (no host-side batch padding)
# ----------------------------------------------------------------------------
@functools.partial(jax.jit, static_argnames=("block_b", "out_dtype"))
def matchup_attention_forward(x_nchw, mkron, bias_row, scales,
                              block_b=128, out_dtype=None):
    B, C, Hh, Ww = x_nchw.shape
    assert (Hh, Ww) == (H, W), "MatchupAttention expects a (B, C, 11, 10) input"
    out_dtype = x_nchw.dtype if out_dtype is None else jnp.dtype(out_dtype)
    x_flat = x_nchw.reshape(B, C, N)

    # Fixed batch tile.  If it is a true tile (Bt < B) keep it a multiple of 8
    # (sublane rule for the (Bt, N) attention output block); the final partial
    # block is handled by Pallas' non-divisible grid (masked boundary stores).
    Bt = min(block_b, B)
    if Bt < B:
        Bt = max(8, (Bt // 8) * 8)
    grid = (pl.cdiv(B, Bt),)

    cost = pl.CostEstimate(
        flops=2 * B * N * N + 6 * B * C * N,
        transcendentals=B * N,
        bytes_accessed=(B * C * N * (x_flat.dtype.itemsize
                                     + jnp.dtype(out_dtype).itemsize)
                        + B * N * 4 + (N * N + N + 2) * 4),
    )

    out_gated, att = pl.pallas_call(
        _matchup_kernel,
        out_shape=(jax.ShapeDtypeStruct((B, C, N), out_dtype),
                   jax.ShapeDtypeStruct((B, N), jnp.float32)),
        grid=grid,
        in_specs=[
            pl.BlockSpec(memory_space=pltpu.MemorySpace.SMEM),  # [w_max, w_avg/C]
            pl.BlockSpec((Bt, C, N), lambda i: (i, 0, 0)),      # x tile
            pl.BlockSpec((N, N), lambda i: (0, 0)),             # folded Linear (resident)
            pl.BlockSpec((1, N), lambda i: (0, 0)),             # bias row (resident)
        ],
        out_specs=[
            pl.BlockSpec((Bt, C, N), lambda i: (i, 0, 0)),
            pl.BlockSpec((Bt, N), lambda i: (i, 0)),
        ],
        compiler_params=pltpu.CompilerParams(
            dimension_semantics=("parallel",),        # v7x: shard batch over both TCs
            vmem_limit_bytes=64 * 1024 * 1024),
        cost_estimate=cost,
    )(scales, x_flat, mkron, bias_row)

    return out_gated.reshape(B, C, H, W), att.reshape(B, 1, H, W)


# ----------------------------------------------------------------------------
# Host-side folding of compress conv + matchups Linear into matmul operands
# ----------------------------------------------------------------------------
def fold_params(P, in_channels):
    w_max = P["compress_w"][0, 0, 0, 0]
    w_avg = P["compress_w"][0, 1, 0, 0]
    b_c = P["compress_b"][0]
    mw, mbias = P["matchups_w"], P["matchups_b"]                 # (10,10), (10,)

    mkron = jnp.kron(jnp.eye(H, dtype=jnp.float32), mw.T)        # (110, 110)
    # Contribution of the compress bias through the Linear, plus the Linear bias.
    bias_row = (b_c * jnp.sum(mkron, axis=0) + jnp.tile(mbias, H)).reshape(1, N)
    # mean folded to sum: second scale carries 1/C.
    scales = jnp.stack([w_max, w_avg / in_channels]).astype(jnp.float32)  # (2,)
    return mkron, bias_row, scales


# ----------------------------------------------------------------------------
# Deterministic parameter init (PyTorch-convention shapes)
# ----------------------------------------------------------------------------
def init_params(key):
    k1, k2, k3, k4 = jax.random.split(key, 4)
    return {
        "compress_w": 0.3 * jax.random.normal(k1, (1, 2, 1, 1), jnp.float32),
        "compress_b": 0.3 * jax.random.normal(k2, (1,), jnp.float32),
        "matchups_w": 0.3 * jax.random.normal(k3, (10, 10), jnp.float32),
        "matchups_b": 0.3 * jax.random.normal(k4, (10,), jnp.float32),
    }


# ----------------------------------------------------------------------------
# Pure-JAX reference (mirrors the PyTorch MatchupAttention.forward exactly)
# ----------------------------------------------------------------------------
def ref_forward(x, P):
    w, b = P["compress_w"], P["compress_b"]
    mx = jnp.max(x, axis=1)                                       # (B, 11, 10)
    mn = jnp.mean(x, axis=1)                                      # (B, 11, 10)
    comp = w[0, 0, 0, 0] * mx + w[0, 1, 0, 0] * mn + b[0]         # compress 1x1 conv
    focused = jnp.einsum("bhw,jw->bhj", comp, P["matchups_w"]) + P["matchups_b"]
    att = jax.nn.sigmoid(focused)[:, None, :, :]                  # (B, 1, 11, 10)
    return x * att, att


if __name__ == "__main__":
    key = jax.random.PRNGKey(0)
    kx1, kx2, kx3, kp = jax.random.split(key, 4)
    C = 32

    P = init_params(kp)
    mkron, bias_row, scales = fold_params(P, C)

    # Three cases: tiny batch (single tile), odd batch (single tile == B), and
    # a multi-step grid with a partial final block (block_b=8, B=20) to
    # exercise the pad-free non-divisible-grid path.
    cases = [
        (jax.random.normal(kx1, (2, C, H, W), jnp.float32), 128),
        (jax.random.normal(kx2, (13, C, H, W), jnp.float32), 128),
        (jax.random.normal(kx3, (20, C, H, W), jnp.float32), 8),
    ]
    for x, bb in cases:
        out, att = matchup_attention_forward(x, mkron, bias_row, scales, block_b=bb)
        out, att = jax.block_until_ready((out, att))

        ref_out, ref_att = ref_forward(x, P)
        assert out.shape == x.shape
        assert att.shape == (x.shape[0], 1, H, W)
        if not (jnp.allclose(out, ref_out, rtol=2e-3, atol=2e-3)
                and jnp.allclose(att, ref_att, rtol=2e-3, atol=2e-3)):
            raise AssertionError("kernel/reference mismatch")

    print("KERNEL_OK")
</pallas_src>

<mosaic_0001>
module attributes {stable_mosaic.version = 11 : i64} {
  func.func @_matchup_kernel(%arg0: i32, %arg1: memref<2xf32, #tpu.memory_space<smem>>, %arg2: memref<2x32x110xf32, #tpu.memory_space<vmem>>, %arg3: memref<110x110xf32, #tpu.memory_space<vmem>>, %arg4: memref<1x110xf32, #tpu.memory_space<vmem>>, %arg5: memref<2x32x110xf32, #tpu.memory_space<vmem>>, %arg6: memref<2x110xf32, #tpu.memory_space<vmem>>) attributes {dimension_semantics = [#tpu.dimension_semantics<parallel>], iteration_bounds = array<i64: 1>, scalar_prefetch = 0 : i64, scratch_operands = 0 : i64, tpu.core_type = #tpu.core_type<tc>, window_params = [{transform_indices = @transform_0, window_bounds = array<i64: 2>}, {transform_indices = @transform_1, window_bounds = array<i64: 2, 32, 110>}, {pipeline_mode = #tpu.pipeline_mode<synchronous>, transform_indices = @transform_2, window_bounds = array<i64: 110, 110>}, {pipeline_mode = #tpu.pipeline_mode<synchronous>, transform_indices = @transform_3, window_bounds = array<i64: 1, 110>}, {transform_indices = @transform_4, window_bounds = array<i64: 2, 32, 110>}, {transform_indices = @transform_5, window_bounds = array<i64: 2, 110>}]} {
    %c0 = arith.constant 0 : index
    %c0_0 = arith.constant 0 : index
    %c0_1 = arith.constant 0 : index
    %0 = vector.load %arg2[%c0, %c0_0, %c0_1] : memref<2x32x110xf32, #tpu.memory_space<vmem>>, vector<2x32x110xf32>
    %cst = arith.constant dense<0xFF800000> : vector<2x110xf32>
    %1 = vector.multi_reduction <maximumf>, %0, %cst [1] : vector<2x32x110xf32> to vector<2x110xf32>
    %cst_2 = arith.constant dense<0.000000e+00> : vector<2x110xf32>
    %2 = vector.multi_reduction <add>, %0, %cst_2 [1] : vector<2x32x110xf32> to vector<2x110xf32>
    %c0_3 = arith.constant 0 : index
    %3 = memref.load %arg1[%c0_3] : memref<2xf32, #tpu.memory_space<smem>>
    %4 = vector.broadcast %3 : f32 to vector<2x110xf32>
    %5 = arith.mulf %4, %1 : vector<2x110xf32>
    %c1 = arith.constant 1 : index
    %6 = memref.load %arg1[%c1] : memref<2xf32, #tpu.memory_space<smem>>
    %7 = vector.broadcast %6 : f32 to vector<2x110xf32>
    %8 = arith.mulf %7, %2 : vector<2x110xf32>
    %9 = arith.addf %5, %8 : vector<2x110xf32>
    %c0_4 = arith.constant 0 : index
    %c0_5 = arith.constant 0 : index
    %10 = vector.load %arg3[%c0_4, %c0_5] : memref<110x110xf32, #tpu.memory_space<vmem>>, vector<110x110xf32>
    %cst_6 = arith.constant dense<0.000000e+00> : vector<2x110xf32>
    %11 = tpu.matmul %9, %10, %cst_6 {dimension_numbers = #tpu.dot_dimension_numbers<[1], [0], [0], [1], [0, 0, 1, 1], [], []>} : vector<2x110xf32>, vector<110x110xf32>, vector<2x110xf32> -> vector<2x110xf32>
    %c0_7 = arith.constant 0 : index
    %c0_8 = arith.constant 0 : index
    %12 = vector.load %arg4[%c0_7, %c0_8] : memref<1x110xf32, #tpu.memory_space<vmem>>, vector<1x110xf32>
    %13 = vector.broadcast %12 : vector<1x110xf32> to vector<2x110xf32>
    %14 = arith.addf %11, %13 : vector<2x110xf32>
    %15 = arith.negf %14 : vector<2x110xf32>
    %16 = math.exp %15 : vector<2x110xf32>
    %cst_9 = arith.constant 1.000000e+00 : f32
    %17 = vector.broadcast %cst_9 : f32 to vector<2x110xf32>
    %18 = arith.addf %17, %16 : vector<2x110xf32>
    %19 = arith.divf %17, %18 : vector<2x110xf32>
    %c0_10 = arith.constant 0 : index
    %c0_11 = arith.constant 0 : index
    %20 = vector.load %arg6[%c0_10, %c0_11] : memref<2x110xf32, #tpu.memory_space<vmem>>, vector<2x110xf32>
    tpu.vector_store %arg6[%c0_10, %c0_11], %19 {strides = array<i32>} : memref<2x110xf32, #tpu.memory_space<vmem>>, vector<2x110xf32>,
    %21 = vector.shape_cast %19 : vector<2x110xf32> to vector<2x1x110xf32>
    %22 = vector.broadcast %21 : vector<2x1x110xf32> to vector<2x32x110xf32>
    %23 = arith.mulf %0, %22 : vector<2x32x110xf32>
    %c0_12 = arith.constant 0 : index
    %c0_13 = arith.constant 0 : index
    %c0_14 = arith.constant 0 : index
    %24 = vector.load %arg5[%c0_12, %c0_13, %c0_14] : memref<2x32x110xf32, #tpu.memory_space<vmem>>, vector<2x32x110xf32>
    tpu.vector_store %arg5[%c0_12, %c0_13, %c0_14], %23 {strides = array<i32>} : memref<2x32x110xf32, #tpu.memory_space<vmem>>, vector<2x32x110xf32>,
    return
  }
  func.func @transform_0(%arg0: i32) -> i32 {
    %c0_i32 = arith.constant 0 : i32
    %c0_i32_0 = arith.constant 0 : i32
    return %c0_i32 : i32
  }
  func.func @transform_1(%arg0: i32) -> (i32, i32, i32) {
    %c0_i32 = arith.constant 0 : i32
    %c0_i32_0 = arith.constant 0 : i32
    %c0_i32_1 = arith.constant 0 : i32
    return %arg0, %c0_i32, %c0_i32_0 : i32, i32, i32
  }
  func.func @transform_2(%arg0: i32) -> (i32, i32) {
    %c0_i32 = arith.constant 0 : i32
    %c0_i32_0 = arith.constant 0 : i32
    %c0_i32_1 = arith.constant 0 : i32
    return %c0_i32, %c0_i32_0 : i32, i32
  }
  func.func @transform_3(%arg0: i32) -> (i32, i32) {
    %c0_i32 = arith.constant 0 : i32
    %c0_i32_0 = arith.constant 0 : i32
    %c0_i32_1 = arith.constant 0 : i32
    return %c0_i32, %c0_i32_0 : i32, i32
  }
  func.func @transform_4(%arg0: i32) -> (i32, i32, i32) {
    %c0_i32 = arith.constant 0 : i32
    %c0_i32_0 = arith.constant 0 : i32
    %c0_i32_1 = arith.constant 0 : i32
    return %arg0, %c0_i32, %c0_i32_0 : i32, i32, i32
  }
  func.func @transform_5(%arg0: i32) -> (i32, i32) {
    %c0_i32 = arith.constant 0 : i32
    %c0_i32_0 = arith.constant 0 : i32
    return %arg0, %c0_i32 : i32, i32
  }
}

</mosaic_0001>

<llo_original>
// kernel: matchup_attention_forward.1
$region0: #{matchup_attention_forward.1}
  #allocation0 [shape = 'u32[]', space=smem, size = 0x4, offset = 0x4, fixed_abs, tag = 'smem constant byte address 0x4 - core index']
  #allocation1 [shape = 'u32[144,128]{1,0:T(1,128)}', space=vmem, size = 0x12000, scoped, tag = 'internal scratch']
  %s0 = inlined_call_operand.hbm [shape: f32[2], index: 0, kind: input, shape index: {}]
  %s1 = inlined_call_operand.hbm [shape: f32[2,32,110], index: 1, kind: input, shape index: {}]
  %s2 = inlined_call_operand.hbm [shape: f32[110,110], index: 2, kind: input, shape index: {}]
  %s3 = inlined_call_operand.hbm [shape: f32[1,110], index: 3, kind: input, shape index: {}]
  %s4 = inlined_call_operand.hbm [shape: f32[2,32,110], index: 4, kind: output, shape index: {0}]
  %s5 = inlined_call_operand.hbm [shape: f32[2,110], index: 5, kind: output, shape index: {1}]
  %6 = xla_tuple %s4, %s5
  %s7 = sld [smem:[#allocation0]]
  $region50: #{matchup_attention_forward.1} parent=0
    _
  %s9 = ssub.s32 1, %s7
  %s10 = scalar_select 0, %s9, %s7
  $region1: #{matchup_attention_forward.1} parent=0
    #allocation2 [shape = 'u8[512]{0}', space=smem, size = 0x200, scoped, tag = 'input window, operand 0, single buffered']
    #allocation3 [shape = 's32[1]{0}', space=sflag, size = 0x4, scoped, tag = 'scoped memory for matchup_attention_forward.1']
    #allocation4 [shape = 's32[1]{0}', space=sflag, size = 0x4, scoped, tag = 'scoped memory for matchup_attention_forward.1']
    #allocation5 [shape = 's32[1]{0}', space=sflag, size = 0x4, scoped, tag = 'scoped memory for matchup_attention_forward.1']
    #allocation6 [shape = 'u8[32768]{0}', space=vmem, size = 0x8000, scoped, tag = 'input window, operand 1, single buffered']
    #allocation7 [shape = 'u8[57344]{0}', space=vmem, size = 0xe000, scoped, tag = 'input window, operand 2, single buffered']
    #allocation8 [shape = 's32[1]{0}', space=sflag, size = 0x4, scoped, tag = 'scoped memory for matchup_attention_forward.1']
    #allocation9 [shape = 'u8[512]{0}', space=vmem, size = 0x400, scoped, tag = 'input window, operand 3, single buffered']
    #allocation10 [shape = 'u8[32768]{0}', space=vmem, size = 0x8000, scoped, tag = 'output window, operand 0, single buffered']
    #allocation11 [shape = 'u8[1024]{0}', space=vmem, size = 0x400, scoped, tag = 'output window, operand 1, single buffered']
    #allocation12 [shape = 's32[1]{0}', space=sflag, size = 0x4, scoped, tag = 'scoped memory for matchup_attention_forward.1']
    %11 = vsyncpa [#allocation5], 0
    %12 = vsyncpa [#allocation3], 0
    %13 = vsyncpa [#allocation8], 0
    %14 = vsyncpa [#allocation4], 0
    %15 = vsyncpa [#allocation12], 0
    // Predicated region
    $region2: #{matchup_attention_forward.1} parent=1 // pred_check
      _
    $region3: #{matchup_attention_forward.1} parent=1 // pred_check_branch
      %17 = sbr.rel (0) target = $region5
    $region4: #{matchup_attention_forward.1} parent=1 // pred_region
      %s19 = ssub.s32 16, 16
      %20 = vsyncadd [#allocation5], %s19
      %23 = dma.hbm_to_smem %s0, 16, [#allocation2], [#allocation5]
    $region5: #{matchup_attention_forward.1} parent=1 // pred_fallthru
      _
    // Predicated region
    $region6: #{matchup_attention_forward.1} parent=1 // pred_check
      _
    $region7: #{matchup_attention_forward.1} parent=1 // pred_check_branch
      %25 = sbr.rel (0) target = $region9
    $region8: #{matchup_attention_forward.1} parent=1 // pred_region
      %s27 = ssub.s32 1024, 1024
      %28 = vsyncadd [#allocation3], %s27
      %s29 = sshll.u32 [#allocation6], 4
      %s30 = int_to_ptr.vmem [resolvable:$true] %s29
      %35 = dma.hbm_to_vmem [thread:$0]  %s1, 1024, %s30, [#allocation3], 128, 128, 8
    $region9: #{matchup_attention_forward.1} parent=1 // pred_fallthru
      _
    // Predicated region
    $region10: #{matchup_attention_forward.1} parent=1 // pred_check
      _
    $region11: #{matchup_attention_forward.1} parent=1 // pred_check_branch
      %37 = sbr.rel (0) target = $region13
    $region12: #{matchup_attention_forward.1} parent=1 // pred_region
      %s39 = ssub.s32 1792, 1792
      %40 = vsyncadd [#allocation8], %s39
      %s41 = sshll.u32 [#allocation7], 4
      %s42 = int_to_ptr.vmem [resolvable:$true] %s41
      %47 = dma.hbm_to_vmem [thread:$0]  %s2, 1792, %s42, [#allocation8], 128, 128, 8
    $region13: #{matchup_attention_forward.1} parent=1 // pred_fallthru
      _
    // Predicated region
    $region14: #{matchup_attention_forward.1} parent=1 // pred_check
      _
    $region15: #{matchup_attention_forward.1} parent=1 // pred_check_branch
      %49 = sbr.rel (0) target = $region17
    $region16: #{matchup_attention_forward.1} parent=1 // pred_region
      %s51 = ssub.s32 16, 16
      %52 = vsyncadd [#allocation8], %s51
      %s54 = sshll.u32 [#allocation9], 4
      %s55 = int_to_ptr.vmem [resolvable:$true] %s54
      %57 = dma.hbm_to_vmem [thread:$0]  %s3, 16, %s55, [#allocation8]
    $region17: #{matchup_attention_forward.1} parent=1 // pred_fallthru
      _
    // Predicated region
    $region18: #{matchup_attention_forward.1} parent=1 // pred_check
      _
    $region19: #{matchup_attention_forward.1} parent=1 // pred_check_branch
      %59 = sbr.rel (0) target = $region21
    $region20: #{matchup_attention_forward.1} parent=1 // pred_region
      %60 = dma.done [#allocation5], 16
    $region21: #{matchup_attention_forward.1} parent=1 // pred_fallthru
      _
    // Predicated region
    $region22: #{matchup_attention_forward.1} parent=1 // pred_check
      _
    $region23: #{matchup_attention_forward.1} parent=1 // pred_check_branch
      %62 = sbr.rel (0) target = $region25
    $region24: #{matchup_attention_forward.1} parent=1 // pred_region
      %63 = dma.done [#allocation3], 1024
    $region25: #{matchup_attention_forward.1} parent=1 // pred_fallthru
      _
    // Predicated region
    $region26: #{matchup_attention_forward.1} parent=1 // pred_check
      _
    $region27: #{matchup_attention_forward.1} parent=1 // pred_check_branch
      %65 = sbr.rel (0) target = $region29
    $region28: #{matchup_attention_forward.1} parent=1 // pred_region
      %66 = dma.done [#allocation8], 1792
    $region29: #{matchup_attention_forward.1} parent=1 // pred_fallthru
      _
    // Predicated region
    $region30: #{matchup_attention_forward.1} parent=1 // pred_check
      _
    $region31: #{matchup_attention_forward.1} parent=1 // pred_check_branch
      %68 = sbr.rel (0) target = $region33
    $region32: #{matchup_attention_forward.1} parent=1 // pred_region
      %69 = dma.done [#allocation8], 16
    $region33: #{matchup_attention_forward.1} parent=1 // pred_fallthru
      _
    %70 = sfence
    %v71 = vld [vmem:[#allocation6] sm:$0xff]
    %v72 = vld [vmem:[#allocation6 + $0x8] sm:$0xff]
    %v73 = vld [vmem:[#allocation6 + $0x10] sm:$0xff]
    %v74 = vld [vmem:[#allocation6 + $0x18] sm:$0xff]
    %v75 = vld [vmem:[#allocation6 + $0x20] sm:$0xff]
    %v76 = vld [vmem:[#allocation6 + $0x28] sm:$0xff]
    %v77 = vld [vmem:[#allocation6 + $0x30] sm:$0xff]
    %v78 = vld [vmem:[#allocation6 + $0x38] sm:$0xff]
    %vm79 = vcmask 900096
    %v80 = vsel %vm79, %v71, -inf
    %v81 = vsel %vm79, %v72, -inf
    %v82 = vsel %vm79, %v73, -inf
    %v83 = vmax.f32 %v80, %v82
    %v84 = vsel %vm79, %v74, -inf
    %v85 = vmax.f32 %v81, %v84
    %v86 = vmax.f32 %v83, %v85
    %v87 = vrot.slane %v86, 4
    %v88 = vmax.f32 %v86, %v87
    %v89 = vrot.slane %v88, 2
    %v90 = vmax.f32 %v88, %v89
    %v91 = vrot.slane %v90, 1
    %v92 = vmax.f32 %v90, %v91
    %v93 = vsel %vm79, %v75, -inf
    %v94 = vsel %vm79, %v76, -inf
    %v95 = vsel %vm79, %v77, -inf
    %v96 = vmax.f32 %v93, %v95
    %v97 = vsel %vm79, %v78, -inf
    %v98 = vmax.f32 %v94, %v97
    %v99 = vmax.f32 %v96, %v98
    %v100 = vrot.slane %v99, 4
    %v101 = vmax.f32 %v99, %v100
    %v102 = vrot.slane %v101, 2
    %v103 = vmax.f32 %v101, %v102
    %v104 = vrot.slane %v103, 1
    %v105 = vmax.f32 %v103, %v104
    %v106 = vsel %vm79, %v71, 0.0
    %v107 = vsel %vm79, %v72, 0.0
    %v108 = vadd.f32 %v106, %v107
    %v109 = vsel %vm79, %v73, 0.0
    %v110 = vadd.f32 %v108, %v109
    %v111 = vsel %vm79, %v74, 0.0
    %v112 = vadd.f32 %v110, %v111
    %v113 = vrot.slane %v112, 4
    %v114 = vadd.f32 %v112, %v113
    %v115 = vrot.slane %v114, 2
    %v116 = vadd.f32 %v114, %v115
    %v117 = vrot.slane %v116, 1
    %v118 = vadd.f32 %v116, %v117
    %v119 = vsel %vm79, %v75, 0.0
    %v120 = vsel %vm79, %v76, 0.0
    %v121 = vadd.f32 %v119, %v120
    %v122 = vsel %vm79, %v77, 0.0
    %v123 = vadd.f32 %v121, %v122
    %v124 = vsel %vm79, %v78, 0.0
    %v125 = vadd.f32 %v123, %v124
    %v126 = vrot.slane %v125, 4
    %v127 = vadd.f32 %v125, %v126
    %v128 = vrot.slane %v127, 2
    %v129 = vadd.f32 %v127, %v128
    %v130 = vrot.slane %v129, 1
    %v131 = vadd.f32 %v129, %v130
    %s132 = sld [smem:[#allocation2]]
    %v133 = vstv %s132
    %v134 = vmul.f32 %v133, %v92
    %v135 = vmul.f32 %v133, %v105
    %s136 = sld [smem:[#allocation2 + $0x1]]
    %v137 = vstv %s136
    %v138 = vmul.f32 %v137, %v118
    %v139 = vmul.f32 %v137, %v131
    %v140 = vadd.f32 %v134, %v138
    %v141 = vadd.f32 %v135, %v139
    %v142 = vld [vmem:[#allocation7] sm:$0xff]
    %v143 = vld [vmem:[#allocation7 + $0x8] sm:$0xff]
    %v144 = vld [vmem:[#allocation7 + $0x10] sm:$0xff]
    %v145 = vld [vmem:[#allocation7 + $0x18] sm:$0xff]
    %v146 = vld [vmem:[#allocation7 + $0x20] sm:$0xff]
    %v147 = vld [vmem:[#allocation7 + $0x28] sm:$0xff]
    %v148 = vld [vmem:[#allocation7 + $0x30] sm:$0xff]
    %v149 = vld [vmem:[#allocation7 + $0x38] sm:$0xff]
    %v150 = vld [vmem:[#allocation7 + $0x40] sm:$0xff]
    %v151 = vld [vmem:[#allocation7 + $0x48] sm:$0xff]
    %v152 = vld [vmem:[#allocation7 + $0x50] sm:$0xff]
    %v153 = vld [vmem:[#allocation7 + $0x58] sm:$0xff]
    %v154 = vld [vmem:[#allocation7 + $0x60] sm:$0xff]
    %v155 = vld [vmem:[#allocation7 + $0x68] sm:$0x3f]
    %v156 = vld [vmem:[#allocation9] sm:$0x1]
    %v158 = vlaneseq
    %v159 = vshrl.u32 %v158, 7
    %v160 = vsub.s32 0, %v159
    %v161 = vrot.slane %v156, %v160
    %vm165 = vcmask 1041409
    %v166 = vsel %vm165, %v141, %v140
    %v167 = vsel %vm79, %v166, 0
    %vm169 = vcmask 1045504
    %v171 = vsel %vm169, %v155, 0
    %173 = vmatprep.subr.mxu0 0.0
    %174 = vmatpush1.msra.mxu0 %v142
    %175 = vmatprep.subr.mxu0 0.0
    %176 = vmatpush1.msra.mxu0 %v143
    %177 = vmatprep.subr.mxu0 0.0
    %178 = vmatpush1.msra.mxu0 %v144
    %179 = vmatprep.subr.mxu0 0.0
    %180 = vmatpush1.msra.mxu0 %v145
    %181 = vmatprep.subr.mxu0 0.0
    %182 = vmatpush1.msra.mxu0 %v146
    %183 = vmatprep.subr.mxu0 0.0
    %184 = vmatpush1.msra.mxu0 %v147
    %185 = vmatprep.subr.mxu0 0.0
    %186 = vmatpush1.msra.mxu0 %v148
    %187 = vmatprep.subr.mxu0 0.0
    %188 = vmatpush1.msra.mxu0 %v149
    %189 = vmatprep.subr.mxu0 0.0
    %190 = vmatpush1.msra.mxu0 %v150
    %191 = vmatprep.subr.mxu0 0.0
    %192 = vmatpush1.msra.mxu0 %v151
    %193 = vmatprep.subr.mxu0 0.0
    %194 = vmatpush1.msra.mxu0 %v152
    %195 = vmatprep.subr.mxu0 0.0
    %196 = vmatpush1.msra.mxu0 %v153
    %197 = vmatprep.subr.mxu0 0.0
    %198 = vmatpush1.msra.mxu0 %v154
    %199 = vmatprep.subr.mxu0 0.0
    %200 = vmatpush1.msra.mxu0 %v171
    %201 = vmatprep.subr.mxu0 0.0
    %202 = vmatpush1.msra.mxu0 0.0
    %203 = vmatprep.subr.mxu0 0.0
    %204 = vmatpush1.msra.mxu0 0.0
    %205 = vmatprep.subr.mxu0 0.0
    %206 = vmatpush1.msra.mxu0 0.0
    %207 = vmatprep.subr.mxu0 0.0
    %208 = vmatpush1.msra.mxu0 0.0
    %209 = vmatprep.subr.mxu0 0.0
    %210 = vmatpush1.msra.mxu0 0.0
    %211 = vmatprep.subr.mxu0 0.0
    %212 = vmatpush1.msra.mxu0 0.0
    %213 = vmatprep.subr.mxu0 0.0
    %214 = vmatpush1.msra.mxu0 0.0
    %215 = vmatprep.subr.mxu0 0.0
    %216 = vmatpush1.msra.mxu0 0.0
    %217 = vmatprep.subr.mxu0 0.0
    %218 = vmatpush1.msra.mxu0 0.0
    %219 = vmatprep.subr.mxu0 0.0
    %220 = vmatpush1.msra.mxu0 0.0
    %221 = vmatprep.subr.mxu0 0.0
    %222 = vmatpush1.msra.mxu0 0.0
    %223 = vmatprep.subr.mxu0 0.0
    %224 = vmatpush1.msra.mxu0 0.0
    %225 = vmatprep.subr.mxu0 0.0
    %226 = vmatpush1.msra.mxu0 0.0
    %227 = vmatprep.subr.mxu0 0.0
    %228 = vmatpush1.msra.mxu0 0.0
    %229 = vmatprep.subr.mxu0 0.0
    %230 = vmatpush1.msra.mxu0 0.0
    %231 = vmatprep.subr.mxu0 0.0
    %232 = vmatpush1.msra.mxu0 0.0
    %233 = vmatprep.subr.mxu0 0.0
    %234 = vmatpush1.msra.mxu0 0.0
    %235 = vmatprep.subr.mxu0 0.0
    %236 = vmatpush1.msra.mxu0 0.0
    %237 = vmatprep.mubr.f32.mxu0 0.0
    %238 = vmatmul.mubr.f32.gmra.mrb[0].mxu0 %v167
    %v239 = vpop.f32.mrb[0].mxu0
    %v240 = vadd.f32 %v161, %v239
    %v241 = vpop.f32.mrb[0].mxu0
    %242 = vdwg.mxu0
    %v243 = vxor.u32 %v240, 2147483648
    %v244 = vmul.f32 %v243, 1.442695
    %v245 = vpow.pop %v244
    %v246 = vadd.f32 %v245, 1.0
    %v247 = vrcp.pop %v246
    %v248 = vmul.f32 1.0, %v247
    %vm249 = vcmask 893952
    %250 = vst.msk [vmem:[#allocation11] sm:$0x3] %vm249, %v248
    %v253 = vunpack.c.l.s4 1966171168
    %v254 = vunpack.c.0.s8 %v253
    %v255 = vlaneseq
    %v256 = vshrl.u32 %v255, 7
    %v257 = vsub.s32 %v254, %v256
    %v258 = vrot.slane %v248, %v257
    %v259 = vcombine.high %v258, %v258
    %v261 = vunpack.c.l.s4 1966171168
    %v262 = vunpack.c.0.s8 %v261
    %v263 = vlaneseq
    %v264 = vshrl.u32 %v263, 7
    %v265 = vsub.s32 %v262, %v264
    %v266 = vrot.slane %v258, %v265
    %v268 = vunpack.c.l.s4 1966171168
    %v269 = vunpack.c.0.s8 %v268
    %v270 = vlaneseq
    %v271 = vshrl.u32 %v270, 7
    %v272 = vsub.s32 %v269, %v271
    %v273 = vrot.slane %v259, %v272
    %v274 = vlaneseq
    %v275 = vshrl.u32 %v274, 7
    %v276 = vsub.s32 0, %v275
    %v277 = vrot.slane %v266, %v276
    %v278 = vlaneseq
    %v279 = vshrl.u32 %v278, 7
    %v280 = vsub.s32 0, %v279
    %v281 = vrot.slane %v273, %v280
    %v284 = vmul.f32 %v71, %v277
    %v285 = vmul.f32 %v72, %v277
    %v286 = vmul.f32 %v73, %v277
    %v287 = vmul.f32 %v74, %v277
    %v288 = vmul.f32 %v75, %v281
    %v289 = vmul.f32 %v76, %v281
    %v290 = vmul.f32 %v77, %v281
    %v291 = vmul.f32 %v78, %v281
    %292 = vst.msk [vmem:[#allocation10] sm:$0xff] %vm79, %v284
    %293 = vst.msk [vmem:[#allocation10 + $0x8] sm:$0xff] %vm79, %v285
    %294 = vst.msk [vmem:[#allocation10 + $0x10] sm:$0xff] %vm79, %v286
    %295 = vst.msk [vmem:[#allocation10 + $0x18] sm:$0xff] %vm79, %v287
    %296 = vst.msk [vmem:[#allocation10 + $0x20] sm:$0xff] %vm79, %v288
    %297 = vst.msk [vmem:[#allocation10 + $0x28] sm:$0xff] %vm79, %v289
    %298 = vst.msk [vmem:[#allocation10 + $0x30] sm:$0xff] %vm79, %v290
    %299 = vst.msk [vmem:[#allocation10 + $0x38] sm:$0xff] %vm79, %v291
    // Predicated region
    $region34: #{matchup_attention_forward.1} parent=1 // pred_check
      _
    $region35: #{matchup_attention_forward.1} parent=1 // pred_check_branch
      %301 = sbr.rel (0) target = $region37
    $region36: #{matchup_attention_forward.1} parent=1 // pred_region
      %s303 = ssub.s32 1024, 1024
      %304 = vsyncadd [#allocation4], %s303
      %s305 = sshll.u32 [#allocation10], 4
      %s306 = int_to_ptr.vmem [resolvable:$true] %s305
      %311 = dma.vmem_to_hbm [thread:$0]  %s306, 1024, %s4, [#allocation4], 128, 128, 8
    $region37: #{matchup_attention_forward.1} parent=1 // pred_fallthru
      _
    // Predicated region
    $region38: #{matchup_attention_forward.1} parent=1 // pred_check
      _
    $region39: #{matchup_attention_forward.1} parent=1 // pred_check_branch
      %313 = sbr.rel (0) target = $region41
    $region40: #{matchup_attention_forward.1} parent=1 // pred_region
      %s315 = ssub.s32 32, 32
      %316 = vsyncadd [#allocation12], %s315
      %s318 = sshll.u32 [#allocation11], 4
      %s319 = int_to_ptr.vmem [resolvable:$true] %s318
      %321 = dma.vmem_to_hbm [thread:$0]  %s319, 32, %s5, [#allocation12]
    $region41: #{matchup_attention_forward.1} parent=1 // pred_fallthru
      _
    // Predicated region
    $region42: #{matchup_attention_forward.1} parent=1 // pred_check
      _
    $region43: #{matchup_attention_forward.1} parent=1 // pred_check_branch
      %323 = sbr.rel (0) target = $region45
    $region44: #{matchup_attention_forward.1} parent=1 // pred_region
      %324 = dma.done [#allocation4], 1024
    $region45: #{matchup_attention_forward.1} parent=1 // pred_fallthru
      _
    // Predicated region
    $region46: #{matchup_attention_forward.1} parent=1 // pred_check
      _
    $region47: #{matchup_attention_forward.1} parent=1 // pred_check_branch
      %326 = sbr.rel (0) target = $region49
    $region48: #{matchup_attention_forward.1} parent=1 // pred_region
      %327 = dma.done [#allocation12], 32
    $region49: #{matchup_attention_forward.1} parent=1 // pred_fallthru
      _
    %328 = vsyncpa [#allocation3], 1
    %329 = vsyncpa [#allocation8], 1
    %330 = vsyncpa [#allocation4], 1
    %331 = vsyncpa [#allocation12], 1
    %332 = vsyncpa [#allocation5], 1

</llo_original>
